<compile_context>
chip_gen: v5e
topology: v5e:2x2
jax: 0.10.0
libtpu: 0.0.40
codegen_flags: <defaults>
</compile_context>

<pallas_src>
import functools

import jax
import jax.numpy as jnp
from jax import lax
from jax.experimental import pallas as pl
from jax.experimental.pallas import tpu as pltpu


def _round_up(x, m):
    return ((x + m - 1) // m) * m


def _round_down(x, m):
    return (x // m) * m


def _ssq_kernel(preds_ref, targets_ref, out_ref, *, rows_total, tile_rows,
                tiles_per_par, lanes):
    """Accumulate the per-lane sum of squared differences.

    preds_ref / targets_ref : (tile_rows, lanes) blocks, native input dtype.
    out_ref                 : (1, 8, lanes) f32.  Its block index depends only
                              on the parallel axis, so it stays resident across
                              the reduction axis and acts as the accumulator.
    """
    p = pl.program_id(0)            # parallel slice (megacore sharding on v7x)
    t = pl.program_id(1)            # reduction step within the slice

    @pl.when(t == 0)
    def _init():
        out_ref[...] = jnp.zeros_like(out_ref)

    # Cast AFTER the DMA so bf16 callers only move bf16 bytes from HBM.
    diff = preds_ref[...].astype(jnp.float32) - targets_ref[...].astype(jnp.float32)
    sq = diff * diff

    # Un-clamped global tile index -> number of valid rows in this block.
    gt = p * tiles_per_par + t
    rows_left = rows_total - gt * tile_rows          # may be <= 0 for dup tiles

    groups = tile_rows // 8

    def _accum(vals):
        # Reduce over the leading (non-minor) axis only: a chain of VALU adds
        # of (8, lanes) slabs; no per-step cross-lane XLU reduce.
        out_ref[...] += jnp.sum(vals.reshape(groups, 8, lanes), axis=0)[None]

    full = rows_left >= tile_rows

    @pl.when(full)
    def _full_tile():
        _accum(sq)

    @pl.when(jnp.logical_not(full))
    def _ragged_tile():
        # Last / duplicated tile: zero rows beyond the real data in-kernel
        # instead of padding both inputs in HBM.
        row_ids = lax.broadcasted_iota(jnp.int32, (tile_rows, lanes), 0)
        _accum(jnp.where(row_ids < rows_left, sq, 0.0))


_FASTPATH_MAX_ELEMS = 16 * 1024   # below this a pallas_call is pure launch overhead


def mcrmse_loss(preds, targets, *, target_block_bytes=2 * 1024 * 1024,
                num_parallel=2, interpret=False):
    """Mean column-wise RMSE for (N, C) preds/targets (any float dtype)."""
    assert preds.shape == targets.shape, \
        "Predictions and targets must have the same shape"
    n, c = preds.shape

    def _jnp_path(p, t):
        d = p.astype(jnp.float32) - t.astype(jnp.float32)
        return jnp.mean(jnp.sqrt(jnp.mean(d * d, axis=0)))

    # Lane-dense view without transpose or pad: row-major (N, C) is
    # bit-identical to (N//reps, reps*C); lane l maps to column (l % C).
    reps = max(1, 128 // c)
    lanes = reps * c
    n_main = (n // reps) * reps
    rows = n_main // reps                      # super-rows of the packed view

    # Tiny problems: keep them in plain jnp so XLA can fuse with the producer.
    if n * c < _FASTPATH_MAX_ELEMS or rows < 16:
        return _jnp_path(preds, targets)

    if n_main == n:
        preds_m = preds.reshape(rows, lanes)
        targets_m = targets.reshape(rows, lanes)
    else:
        # TODO(synk): if the producer guarantees n % reps == 0 (or hands us a
        # (C, N)-major layout) this slice disappears entirely.
        preds_m = preds[:n_main].reshape(rows, lanes)
        targets_m = targets[:n_main].reshape(rows, lanes)

    # Tile the super-row axis.  Sized off the f32 working set (~2 MiB per
    # input block) so per-grid-step HBM traffic dwarfs the ~0.35 us step
    # overhead while 2 inputs x 2 pipeline buffers + f32 intermediates stay
    # well under the 32 MiB VMEM limit requested below (fits v5e/v6e/v7x).
    tile_rows = _round_down(target_block_bytes // (lanes * 4), 16)
    tile_rows = max(16, min(tile_rows, 8192))
    tile_rows = min(tile_rows, _round_down(rows, 16))

    num_tiles = pl.cdiv(rows, tile_rows)
    num_par = max(1, min(int(num_parallel), num_tiles))
    tiles_per_par = pl.cdiv(num_tiles, num_par)

    def in_map(p, t):
        # Clamp so grid points past the real data (num_tiles % num_par != 0)
        # re-read the last real block; their rows are masked to zero in-kernel.
        return (jnp.minimum(p * tiles_per_par + t, num_tiles - 1), 0)

    kernel = functools.partial(
        _ssq_kernel, rows_total=rows, tile_rows=tile_rows,
        tiles_per_par=tiles_per_par, lanes=lanes)

    partials = pl.pallas_call(
        kernel,
        out_shape=jax.ShapeDtypeStruct((num_par, 8, lanes), jnp.float32),
        grid_spec=pltpu.PrefetchScalarGridSpec(
            num_scalar_prefetch=0,
            grid=(num_par, tiles_per_par),
            in_specs=[
                pl.BlockSpec((tile_rows, lanes), in_map),
                pl.BlockSpec((tile_rows, lanes), in_map),
            ],
            out_specs=pl.BlockSpec((1, 8, lanes), lambda p, t: (p, 0, 0)),
        ),
        compiler_params=pltpu.CompilerParams(
            dimension_semantics=("parallel", "arbitrary"),
            vmem_limit_bytes=32 * 1024 * 1024,
        ),
        interpret=interpret,
    )(preds_m, targets_m)

    # Combine: parallel slices + sublane groups -> (lanes,), then fold the
    # `reps` interleaved copies of each column -> per-column sum of squares.
    ssq_col = jnp.sum(partials, axis=(0, 1)).reshape(reps, c).sum(axis=0)

    # Ragged row tail (< reps rows) that did not fit the packed view.
    if n_main != n:
        d_tail = (preds[n_main:].astype(jnp.float32)
                  - targets[n_main:].astype(jnp.float32))
        ssq_col = ssq_col + jnp.sum(d_tail * d_tail, axis=0)

    mse = ssq_col / jnp.float32(n)                 # divide by the TRUE N
    return jnp.mean(jnp.sqrt(mse))


if __name__ == "__main__":
    key = jax.random.PRNGKey(0)
    k1, k2, k3, k4, k5, k6 = jax.random.split(key, 6)

    def ref_loss(p, t):
        d = p.astype(jnp.float32) - t.astype(jnp.float32)
        return jnp.mean(jnp.sqrt(jnp.mean(d * d, axis=0)))

    # 1) Tiny production-like shape (batch=8, num_targets=6): jnp fast path.
    p0 = jax.random.normal(k1, (8, 6), dtype=jnp.float32)
    t0 = jax.random.normal(k2, (8, 6), dtype=jnp.float32)
    l0 = jax.block_until_ready(mcrmse_loss(p0, t0))
    r0 = ref_loss(p0, t0)
    assert jnp.allclose(l0, r0, rtol=1e-5, atol=1e-6), (l0, r0)

    # 2) Kernel path, f32, N not divisible by reps(=21) nor by the tile size:
    #    exercises the in-kernel ragged-row mask, the clamped duplicate tile
    #    on the parallel axis, and the tiny jnp row tail.
    p1 = jax.random.normal(k3, (6150, 6), dtype=jnp.float32)
    t1 = jax.random.normal(k4, (6150, 6), dtype=jnp.float32)
    l1 = jax.block_until_ready(mcrmse_loss(p1, t1))
    r1 = ref_loss(p1, t1)
    assert jnp.allclose(l1, r1, rtol=1e-4, atol=1e-5), (l1, r1)

    # 3) Kernel path, bf16 inputs (stay bf16 across the HBM->VMEM DMA),
    #    N divisible by reps -> pure reshape view, no tail, single tile.
    p2 = jax.random.normal(k5, (5376, 6), dtype=jnp.float32).astype(jnp.bfloat16)
    t2 = jax.random.normal(k6, (5376, 6), dtype=jnp.float32).astype(jnp.bfloat16)
    l2 = jax.block_until_ready(mcrmse_loss(p2, t2))
    r2 = ref_loss(p2, t2)
    assert jnp.allclose(l2, r2, rtol=1e-3, atol=1e-3), (l2, r2)

    print("KERNEL_OK")
</pallas_src>

<mosaic_0001>
module attributes {stable_mosaic.version = 11 : i64} {
  func.func @_ssq_kernel(%arg0: i32, %arg1: i32, %arg2: memref<288x126xf32, #tpu.memory_space<vmem>>, %arg3: memref<288x126xf32, #tpu.memory_space<vmem>>, %arg4: memref<1x8x126xf32, #tpu.memory_space<vmem>>) attributes {dimension_semantics = [#tpu.dimension_semantics<parallel>, #tpu.dimension_semantics<arbitrary>], iteration_bounds = array<i64: 2, 1>, scalar_prefetch = 0 : i64, scratch_operands = 0 : i64, tpu.core_type = #tpu.core_type<tc>, window_params = [{transform_indices = @transform_0, window_bounds = array<i64: 288, 126>}, {transform_indices = @transform_1, window_bounds = array<i64: 288, 126>}, {transform_indices = @transform_2, window_bounds = array<i64: 1, 8, 126>}]} {
    %c0_i32 = arith.constant 0 : i32
    %0 = arith.cmpi eq, %arg1, %c0_i32 : i32
    %1 = arith.extui %0 : i1 to i32
    %c0_i32_0 = arith.constant 0 : i32
    %2 = arith.cmpi ne, %1, %c0_i32_0 : i32
    scf.if %2 {
      %cst = arith.constant 0.000000e+00 : f32
      %17 = vector.broadcast %cst : f32 to vector<1x8x126xf32>
      %c0_7 = arith.constant 0 : index
      %c0_8 = arith.constant 0 : index
      %c0_9 = arith.constant 0 : index
      %18 = vector.load %arg4[%c0_7, %c0_8, %c0_9] : memref<1x8x126xf32, #tpu.memory_space<vmem>>, vector<1x8x126xf32>
      tpu.vector_store %arg4[%c0_7, %c0_8, %c0_9], %17 {strides = array<i32>} : memref<1x8x126xf32, #tpu.memory_space<vmem>>, vector<1x8x126xf32>,
    } else {
    }
    %c0 = arith.constant 0 : index
    %c0_1 = arith.constant 0 : index
    %3 = vector.load %arg2[%c0, %c0_1] : memref<288x126xf32, #tpu.memory_space<vmem>>, vector<288x126xf32>
    %c0_2 = arith.constant 0 : index
    %c0_3 = arith.constant 0 : index
    %4 = vector.load %arg3[%c0_2, %c0_3] : memref<288x126xf32, #tpu.memory_space<vmem>>, vector<288x126xf32>
    %5 = arith.subf %3, %4 : vector<288x126xf32>
    %6 = arith.mulf %5, %5 : vector<288x126xf32>
    %c1_i32 = arith.constant 1 : i32
    %7 = arith.muli %arg0, %c1_i32 : i32
    %8 = arith.addi %7, %arg1 : i32
    %c288_i32 = arith.constant 288 : i32
    %9 = arith.muli %8, %c288_i32 : i32
    %c292_i32 = arith.constant 292 : i32
    %10 = arith.subi %c292_i32, %9 : i32
    %c288_i32_4 = arith.constant 288 : i32
    %11 = arith.cmpi sge, %10, %c288_i32_4 : i32
    %12 = arith.extui %11 : i1 to i32
    %c0_i32_5 = arith.constant 0 : i32
    %13 = arith.cmpi ne, %12, %c0_i32_5 : i32
    scf.if %13 {
      %c0_7 = arith.constant 0 : index
      %c0_8 = arith.constant 0 : index
      %c0_9 = arith.constant 0 : index
      %17 = vector.load %arg4[%c0_7, %c0_8, %c0_9] : memref<1x8x126xf32, #tpu.memory_space<vmem>>, vector<1x8x126xf32>
      %18 = vector.shape_cast %6 : vector<288x126xf32> to vector<36x8x126xf32>
      %cst = arith.constant dense<0.000000e+00> : vector<8x126xf32>
      %19 = vector.multi_reduction <add>, %18, %cst [0] : vector<36x8x126xf32> to vector<8x126xf32>
      %20 = vector.shape_cast %19 : vector<8x126xf32> to vector<1x8x126xf32>
      %21 = arith.addf %17, %20 : vector<1x8x126xf32>
      %c0_10 = arith.constant 0 : index
      %c0_11 = arith.constant 0 : index
      %c0_12 = arith.constant 0 : index
      %22 = vector.load %arg4[%c0_10, %c0_11, %c0_12] : memref<1x8x126xf32, #tpu.memory_space<vmem>>, vector<1x8x126xf32>
      tpu.vector_store %arg4[%c0_10, %c0_11, %c0_12], %21 {strides = array<i32>} : memref<1x8x126xf32, #tpu.memory_space<vmem>>, vector<1x8x126xf32>,
    } else {
    }
    %true = arith.constant true
    %14 = arith.xori %11, %true : i1
    %15 = arith.extui %14 : i1 to i32
    %c0_i32_6 = arith.constant 0 : i32
    %16 = arith.cmpi ne, %15, %c0_i32_6 : i32
    scf.if %16 {
      %17 = tpu.iota {dimensions = array<i32: 0>} : vector<288x126xi32>
      %18 = vector.broadcast %10 : i32 to vector<288x126xi32>
      %19 = arith.cmpi slt, %17, %18 : vector<288x126xi32>
      %cst = arith.constant 0.000000e+00 : f32
      %20 = vector.broadcast %cst : f32 to vector<288x126xf32>
      %21 = arith.select %19, %6, %20 : vector<288x126xi1>, vector<288x126xf32>
      %c0_7 = arith.constant 0 : index
      %c0_8 = arith.constant 0 : index
      %c0_9 = arith.constant 0 : index
      %22 = vector.load %arg4[%c0_7, %c0_8, %c0_9] : memref<1x8x126xf32, #tpu.memory_space<vmem>>, vector<1x8x126xf32>
      %23 = vector.shape_cast %21 : vector<288x126xf32> to vector<36x8x126xf32>
      %cst_10 = arith.constant dense<0.000000e+00> : vector<8x126xf32>
      %24 = vector.multi_reduction <add>, %23, %cst_10 [0] : vector<36x8x126xf32> to vector<8x126xf32>
      %25 = vector.shape_cast %24 : vector<8x126xf32> to vector<1x8x126xf32>
      %26 = arith.addf %22, %25 : vector<1x8x126xf32>
      %c0_11 = arith.constant 0 : index
      %c0_12 = arith.constant 0 : index
      %c0_13 = arith.constant 0 : index
      %27 = vector.load %arg4[%c0_11, %c0_12, %c0_13] : memref<1x8x126xf32, #tpu.memory_space<vmem>>, vector<1x8x126xf32>
      tpu.vector_store %arg4[%c0_11, %c0_12, %c0_13], %26 {strides = array<i32>} : memref<1x8x126xf32, #tpu.memory_space<vmem>>, vector<1x8x126xf32>,
    } else {
    }
    return
  }
  func.func @transform_0(%arg0: i32, %arg1: i32) -> (i32, i32) {
    %c1_i32 = arith.constant 1 : i32
    %0 = arith.muli %arg0, %c1_i32 : i32
    %1 = arith.addi %0, %arg1 : i32
    %c1_i32_0 = arith.constant 1 : i32
    %2 = arith.minsi %1, %c1_i32_0 : i32
    %c0_i32 = arith.constant 0 : i32
    %c0_i32_1 = arith.constant 0 : i32
    return %2, %c0_i32 : i32, i32
  }
  func.func @transform_1(%arg0: i32, %arg1: i32) -> (i32, i32) {
    %c1_i32 = arith.constant 1 : i32
    %0 = arith.muli %arg0, %c1_i32 : i32
    %1 = arith.addi %0, %arg1 : i32
    %c1_i32_0 = arith.constant 1 : i32
    %2 = arith.minsi %1, %c1_i32_0 : i32
    %c0_i32 = arith.constant 0 : i32
    %c0_i32_1 = arith.constant 0 : i32
    return %2, %c0_i32 : i32, i32
  }
  func.func @transform_2(%arg0: i32, %arg1: i32) -> (i32, i32, i32) {
    %c0_i32 = arith.constant 0 : i32
    %c0_i32_0 = arith.constant 0 : i32
    %c0_i32_1 = arith.constant 0 : i32
    return %arg0, %c0_i32, %c0_i32_0 : i32, i32, i32
  }
}

</mosaic_0001>

<llo_original>
// kernel: tpu_custom_call.1
$region0: #{tpu_custom_call.1}
  #allocation0 [shape = 'u32[]', space=smem, size = 0x4, offset = 0x4, fixed_abs, tag = 'smem constant byte address 0x4 - core index']
  #allocation1 [shape = 'u32[72,128]{1,0:T(1,128)}', space=vmem, size = 0x9000, scoped, tag = 'internal scratch']
  %s0 = inlined_call_operand.hbm [shape: f32[292,126], index: 0, kind: input, shape index: {}]
  %s1 = inlined_call_operand.hbm [shape: f32[292,126], index: 1, kind: input, shape index: {}]
  %s2 = inlined_call_operand.hbm [shape: f32[2,8,126], index: 2, kind: output, shape index: {}]
  %s3 = sld [smem:[#allocation0]]
  $region61: #{tpu_custom_call.1} parent=0
    _
  %s5 = ssub.s32 1, %s3
  %s6 = scalar_select 0, %s5, %s3
  $region1: #{tpu_custom_call.1} parent=0
    #allocation2 [shape = 'u8[294912]{0}', space=vmem, size = 0x48000, scoped, tag = 'input window, operand 0']
    #allocation3 [shape = 's32[2]{0}', space=sflag, size = 0x8, scoped, tag = 'scoped memory for tpu_custom_call.1']
    #allocation4 [shape = 's32[2]{0}', space=sflag, size = 0x8, scoped, tag = 'scoped memory for tpu_custom_call.1']
    #allocation5 [shape = 'u8[294912]{0}', space=vmem, size = 0x48000, scoped, tag = 'input window, operand 1']
    #allocation6 [shape = 's32[2]{0}', space=sflag, size = 0x8, scoped, tag = 'scoped memory for tpu_custom_call.1']
    #allocation7 [shape = 'u8[8192]{0}', space=vmem, size = 0x2000, scoped, tag = 'output window, operand 0']
    %7 = vsyncpa [#allocation3], 0
    %s8 = scalar_lea.sflag [#allocation3], 1
    %9 = vsyncpa %s8, 0
    %10 = vsyncpa [#allocation6], 0
    %s11 = scalar_lea.sflag [#allocation6], 1
    %12 = vsyncpa %s11, 0
    %13 = vsyncpa [#allocation4], 0
    %s14 = scalar_lea.sflag [#allocation4], 1
    %15 = vsyncpa %s14, 0
    loop: start=0, step=1, limit=4
    $region2: #{tpu_custom_call.1} parent=1 // loop_pre_header
      _
    $region3: #{tpu_custom_call.1} parent=1 // loop_header
      %s17 = sphi 0, %s21
      %p18 = scmp.ge.s32.totalorder %s17, 4
      %s24 = sphi 0, %s36
      %s25 = sphi 0, %s32
      %s26 = sphi 0, %s24
      %s27 = sphi 0, %s25
      %s28 = sphi 0, %s26
      %s29 = sphi 0, %s27
      %s45 = sphi 0, %s47
      %s48 = sphi 0, %s45
      %s49 = sphi 0, %s48
      %s65 = sphi 0, %s49
      %s77 = sphi 0, %s79
      %s80 = sphi 0, %s77
      %s81 = sphi 0, %s80
      %s97 = sphi 0, %s81
      %s103 = sphi 0, %s105
      %s106 = sphi 0, %s103
      %s107 = sphi 0, %s106
      %s123 = sphi 0, %s107
    $region4: #{tpu_custom_call.1} parent=1 // loop_header_branch
      %20 = sbr.rel (%p18) target = $region8
    $region5: #{tpu_custom_call.1} parent=1 // loop_body
      %s22 = ssub.s32 %s17, 1
      %s23 = ssub.s32 %s17, 2
      %s30 = sadd.s32 1, %s25
      %p31 = scmp.ge.s32.totalorder %s30, 1
      %s32 = scalar_select %p31, 0, %s30
      %s33 = sadd.s32 1, %s24
      %s34 = scalar_select %p31, %s33, %s24
      %p35 = scmp.ge.s32.totalorder %s34, 2
      %s36 = scalar_select %p35, 0, %s34
      %s37 = sadd.s32 %s24, %s25
      %p38 = scmp.lt.s32.totalorder %s37, 1
      %s39 = scalar_select %p38, %s37, 1
      %s40 = sadd.s32 %s36, %s32
      %p41 = scmp.lt.s32.totalorder %s40, 1
      %s42 = scalar_select %p41, %s40, 1
      %s43 = ssub.s32 %s39, %s42
      %p44 = scmp.eq.s32.totalorder %s43, 0
      %s46 = sadd.s32 %s45, 1
      %s47 = scalar_select %p44, %s45, %s46
      %p50 = pneg %p44
      %p51 = scmp.eq.s32.totalorder %s17, 1
      %p52 = por %p50, %p51
      %p53 = scmp.ne.s32.totalorder %s45, %s48
      %p54 = scmp.eq.s32.totalorder %s17, 0
      %p55 = por %p53, %p54
      %p56 = scmp.ne.s32.totalorder %s45, %s48
      %p57 = scmp.eq.s32.totalorder %s22, 1
      %p58 = por %p56, %p57
      %p59 = scmp.ne.s32.totalorder %s48, %s49
      %p60 = scmp.eq.s32.totalorder %s22, 0
      %p61 = por %p59, %p60
      %p62 = scmp.ne.s32.totalorder %s48, %s49
      %p63 = scmp.eq.s32.totalorder %s23, 1
      %p64 = por %p62, %p63
      %p66 = scmp.ne.s32.totalorder %s49, %s65
      %p67 = scmp.eq.s32.totalorder %s23, 0
      %p68 = por %p66, %p67
      %s69 = sadd.s32 %s24, %s25
      %p70 = scmp.lt.s32.totalorder %s69, 1
      %s71 = scalar_select %p70, %s69, 1
      %s72 = sadd.s32 %s36, %s32
      %p73 = scmp.lt.s32.totalorder %s72, 1
      %s74 = scalar_select %p73, %s72, 1
      %s75 = ssub.s32 %s71, %s74
      %p76 = scmp.eq.s32.totalorder %s75, 0
      %s78 = sadd.s32 %s77, 1
      %s79 = scalar_select %p76, %s77, %s78
      %p82 = pneg %p76
      %p83 = scmp.eq.s32.totalorder %s17, 1
      %p84 = por %p82, %p83
      %p85 = scmp.ne.s32.totalorder %s77, %s80
      %p86 = scmp.eq.s32.totalorder %s17, 0
      %p87 = por %p85, %p86
      %p88 = scmp.ne.s32.totalorder %s77, %s80
      %p89 = scmp.eq.s32.totalorder %s22, 1
      %p90 = por %p88, %p89
      %p91 = scmp.ne.s32.totalorder %s80, %s81
      %p92 = scmp.eq.s32.totalorder %s22, 0
      %p93 = por %p91, %p92
      %p94 = scmp.ne.s32.totalorder %s80, %s81
      %p95 = scmp.eq.s32.totalorder %s23, 1
      %p96 = por %p94, %p95
      %p98 = scmp.ne.s32.totalorder %s81, %s97
      %p99 = scmp.eq.s32.totalorder %s23, 0
      %p100 = por %p98, %p99
      %s101 = ssub.s32 %s24, %s36
      %p102 = scmp.eq.s32.totalorder %s101, 0
      %s104 = sadd.s32 %s103, 1
      %s105 = scalar_select %p102, %s103, %s104
      %p108 = pneg %p102
      %p109 = scmp.eq.s32.totalorder %s17, 1
      %p110 = por %p108, %p109
      %p111 = scmp.ne.s32.totalorder %s103, %s106
      %p112 = scmp.eq.s32.totalorder %s17, 0
      %p113 = por %p111, %p112
      %p114 = scmp.ne.s32.totalorder %s103, %s106
      %p115 = scmp.eq.s32.totalorder %s22, 1
      %p116 = por %p114, %p115
      %p117 = scmp.ne.s32.totalorder %s106, %s107
      %p118 = scmp.eq.s32.totalorder %s22, 0
      %p119 = por %p117, %p118
      %p120 = scmp.ne.s32.totalorder %s106, %s107
      %p121 = scmp.eq.s32.totalorder %s23, 1
      %p122 = por %p120, %p121
      %p124 = scmp.ne.s32.totalorder %s107, %s123
      %p125 = scmp.eq.s32.totalorder %s23, 0
      %p126 = por %p124, %p125
      %p127 = scmp.le.s32.totalorder 1, %s17
      %p128 = scmp.lt.s32.totalorder %s17, 3
      %p129 = pnand %p127, %p128
      %p130 = pneg %p129
      // Predicated region
      $region9: #{tpu_custom_call.1} parent=5 // pred_check
        _
      $region10: #{tpu_custom_call.1} parent=5 // pred_check_branch
        %132 = sbr.rel (%p129) target = $region12
      $region11: #{tpu_custom_call.1} parent=5 // pred_region
        %s133 = ssub.s32 %s17, 1
      $region12: #{tpu_custom_call.1} parent=5 // pred_fallthru
        _
      %p134 = scmp.lt.s32.totalorder %s17, 2
      // Predicated region
      $region13: #{tpu_custom_call.1} parent=5 // pred_check
        %p135 = pneg %p134
      $region14: #{tpu_custom_call.1} parent=5 // pred_check_branch
        %137 = sbr.rel (%p135) target = $region16
      $region15: #{tpu_custom_call.1} parent=5 // pred_region
        // Predicated region
        $region17: #{tpu_custom_call.1} parent=15 // pred_check
          %p138 = pneg %p55
        $region18: #{tpu_custom_call.1} parent=15 // pred_check_branch
          %140 = sbr.rel (%p138) target = $region20
        $region19: #{tpu_custom_call.1} parent=15 // pred_region
          %s141 = sand.u32 %s45, 1
          %s142 = scalar_lea.sflag [#allocation3], %s141
          %s143 = sand.u32 %s45, 1
          %s144 = smul.addr %s143, 288
          %s145 = scalar_lea.vmem [#allocation2], %s144
          %s146 = sadd.s32 %s24, %s25
          %p147 = scmp.lt.s32.totalorder %s146, 1
          %s148 = scalar_select %p147, %s146, 1
          %s149 = smul.u32 36, %s148
          %s150 = ssub.s32 37, %s149
          %p151 = scmp.lt.s32.totalorder %s150, 36
          %s152 = scalar_select %p151, %s150, 36
          %s153 = smul.u32 8, %s152
          %s154 = ssub.s32 288, %s153
          %s155 = sshll.u32 %s154, 4
          %156 = vsyncadd %s142, %s155
          %p157 = scmp.ne.s32.totalorder 0, %s153
          %s158 = smul.addr %s149, 8
          %s159 = scalar_lea.hbm %s0, %s158
          %s160 = smul.u32 8, %s152
          %s161 = sshll.u32 %s159, 4
          %s162 = int_to_ptr.hbm [resolvable:$true] %s161
          %s163 = sshll.u32 %s145, 4
          %s164 = int_to_ptr.vmem [resolvable:$true] %s163
          %s165 = sshll.u32 %s160, 4
          %169 = dma.hbm_to_vmem [thread:$0]  (%p157), %s162, %s165, %s164, %s142, 128, 128, 8
        $region20: #{tpu_custom_call.1} parent=15 // pred_fallthru
          _
        // Predicated region
        $region21: #{tpu_custom_call.1} parent=15 // pred_check
          %p170 = pneg %p87
        $region22: #{tpu_custom_call.1} parent=15 // pred_check_branch
          %172 = sbr.rel (%p170) target = $region24
        $region23: #{tpu_custom_call.1} parent=15 // pred_region
          %s173 = sand.u32 %s77, 1
          %s174 = scalar_lea.sflag [#allocation6], %s173
          %s175 = sand.u32 %s77, 1
          %s176 = smul.addr %s175, 288
          %s177 = scalar_lea.vmem [#allocation5], %s176
          %s178 = sadd.s32 %s24, %s25
          %p179 = scmp.lt.s32.totalorder %s178, 1
          %s180 = scalar_select %p179, %s178, 1
          %s181 = smul.u32 36, %s180
          %s182 = ssub.s32 37, %s181
          %p183 = scmp.lt.s32.totalorder %s182, 36
          %s184 = scalar_select %p183, %s182, 36
          %s185 = smul.u32 8, %s184
          %s186 = ssub.s32 288, %s185
          %s187 = sshll.u32 %s186, 4
          %188 = vsyncadd %s174, %s187
          %p189 = scmp.ne.s32.totalorder 0, %s185
          %s190 = smul.addr %s181, 8
          %s191 = scalar_lea.hbm %s1, %s190
          %s192 = smul.u32 8, %s184
          %s193 = sshll.u32 %s191, 4
          %s194 = int_to_ptr.hbm [resolvable:$true] %s193
          %s195 = sshll.u32 %s177, 4
          %s196 = int_to_ptr.vmem [resolvable:$true] %s195
          %s197 = sshll.u32 %s192, 4
          %201 = dma.hbm_to_vmem [thread:$0]  (%p189), %s194, %s197, %s196, %s174, 128, 128, 8
        $region24: #{tpu_custom_call.1} parent=15 // pred_fallthru
          _
      $region16: #{tpu_custom_call.1} parent=5 // pred_fallthru
        _
      %p202 = scmp.le.s32.totalorder 1, %s17
      %p203 = scmp.lt.s32.totalorder %s17, 3
      %p204 = pnand %p202, %p203
      %p205 = pneg %p204
      // Predicated region
      $region25: #{tpu_custom_call.1} parent=5 // pred_check
        _
      $region26: #{tpu_custom_call.1} parent=5 // pred_check_branch
        %207 = sbr.rel (%p204) target = $region28
      $region27: #{tpu_custom_call.1} parent=5 // pred_region
        %s208 = ssub.s32 %s17, 1
        %s209 = sand.u32 %s48, 1
        %s210 = scalar_lea.sflag [#allocation3], %s209
        %s211 = sand.u32 %s48, 1
        %s212 = smul.addr %s211, 288
        %s213 = scalar_lea.vmem [#allocation2], %s212
        // Predicated region
        $region29: #{tpu_custom_call.1} parent=27 // pred_check
          %p214 = pneg %p61
        $region30: #{tpu_custom_call.1} parent=27 // pred_check_branch
          %216 = sbr.rel (%p214) target = $region32
        $region31: #{tpu_custom_call.1} parent=27 // pred_region
          %218 = dma.done %s210, 4608
        $region32: #{tpu_custom_call.1} parent=27 // pred_fallthru
          _
        %s219 = sand.u32 %s80, 1
        %s220 = scalar_lea.sflag [#allocation6], %s219
        %s221 = sand.u32 %s80, 1
        %s222 = smul.addr %s221, 288
        %s223 = scalar_lea.vmem [#allocation5], %s222
        // Predicated region
        $region33: #{tpu_custom_call.1} parent=27 // pred_check
          %p224 = pneg %p93
        $region34: #{tpu_custom_call.1} parent=27 // pred_check_branch
          %226 = sbr.rel (%p224) target = $region36
        $region35: #{tpu_custom_call.1} parent=27 // pred_region
          %228 = dma.done %s220, 4608
        $region36: #{tpu_custom_call.1} parent=27 // pred_fallthru
          _
        %s229 = sand.u32 %s48, 1
        %s230 = scalar_lea.sflag [#allocation3], %s229
        %s231 = sand.u32 %s48, 1
        %s232 = smul.addr %s231, 288
        %s233 = scalar_lea.vmem [#allocation2], %s232
        %p234 = pneg %p61
        %p235 = pneg %p58
        %s236 = sand.u32 %s80, 1
        %s237 = scalar_lea.sflag [#allocation6], %s236
        %s238 = sand.u32 %s80, 1
        %s239 = smul.addr %s238, 288
        %s240 = scalar_lea.vmem [#allocation5], %s239
        %p241 = pneg %p93
        %p242 = pneg %p90
        %p243 = pneg %p119
        %p244 = pneg %p116
        %s245 = sand.u32 %s106, 1
        %s246 = scalar_lea.sflag [#allocation4], %s245
        %s247 = sand.u32 %s106, 1
        %s248 = smul.addr %s247, 8
        %s249 = scalar_lea.vmem [#allocation7], %s248
        %s250 = sadd.s32 %s26, %s27
        %p251 = scmp.lt.s32.totalorder %s250, 1
        %s252 = scalar_select %p251, %s250, 1
        %s253 = smul.u32 36, %s252
        %s254 = ssub.s32 37, %s253
        %p255 = scmp.lt.s32.totalorder %s254, 36
        %s256 = scalar_select %p255, %s254, 36
        %s257 = smul.u32 8, %s256
        %s258 = sadd.s32 %s26, %s27
        %p259 = scmp.lt.s32.totalorder %s258, 1
        %s260 = scalar_select %p259, %s258, 1
        %s261 = smul.u32 36, %s260
        %s262 = ssub.s32 37, %s261
        %p263 = scmp.lt.s32.totalorder %s262, 36
        %s264 = scalar_select %p263, %s262, 36
        %s265 = smul.u32 8, %s264
        %p266 = scmp.eq.s32.totalorder %s27, 0
        // Predicated region
        $region37: #{tpu_custom_call.1} parent=27 // pred_check
          %p267 = pneg %p266
        $region38: #{tpu_custom_call.1} parent=27 // pred_check_branch
          %269 = sbr.rel (%p267) target = $region40
        $region39: #{tpu_custom_call.1} parent=27 // pred_region
          %vm270 = vcmask 1031168
          %271 = vst.msk [vmem:[%s249] sm:$0xff] %vm270, 0.0
        $region40: #{tpu_custom_call.1} parent=27 // pred_fallthru
          _
        %v272 = vld [vmem:[%s213] sm:$0xff]
        %v273 = vld [vmem:[%s213 + $0x8] sm:$0xff]
        %v274 = vld [vmem:[%s213 + $0x10] sm:$0xff]
        %v275 = vld [vmem:[%s213 + $0x18] sm:$0xff]
        %v276 = vld [vmem:[%s213 + $0x20] sm:$0xff]
        %v277 = vld [vmem:[%s213 + $0x28] sm:$0xff]
        %v278 = vld [vmem:[%s213 + $0x30] sm:$0xff]
        %v279 = vld [vmem:[%s213 + $0x38] sm:$0xff]
        %v280 = vld [vmem:[%s213 + $0x40] sm:$0xff]
        %v281 = vld [vmem:[%s213 + $0x48] sm:$0xff]
        %v282 = vld [vmem:[%s213 + $0x50] sm:$0xff]
        %v283 = vld [vmem:[%s213 + $0x58] sm:$0xff]
        %v284 = vld [vmem:[%s213 + $0x60] sm:$0xff]
        %v285 = vld [vmem:[%s213 + $0x68] sm:$0xff]
        %v286 = vld [vmem:[%s213 + $0x70] sm:$0xff]
        %v287 = vld [vmem:[%s213 + $0x78] sm:$0xff]
        %v288 = vld [vmem:[%s213 + $0x80] sm:$0xff]
        %v289 = vld [vmem:[%s213 + $0x88] sm:$0xff]
        %v290 = vld [vmem:[%s213 + $0x90] sm:$0xff]
        %v291 = vld [vmem:[%s213 + $0x98] sm:$0xff]
        %v292 = vld [vmem:[%s213 + $0xa0] sm:$0xff]
        %v293 = vld [vmem:[%s213 + $0xa8] sm:$0xff]
        %v294 = vld [vmem:[%s213 + $0xb0] sm:$0xff]
        %v295 = vld [vmem:[%s213 + $0xb8] sm:$0xff]
        %v296 = vld [vmem:[%s213 + $0xc0] sm:$0xff]
        %v297 = vld [vmem:[%s213 + $0xc8] sm:$0xff]
        %v298 = vld [vmem:[%s213 + $0xd0] sm:$0xff]
        %v299 = vld [vmem:[%s213 + $0xd8] sm:$0xff]
        %v300 = vld [vmem:[%s213 + $0xe0] sm:$0xff]
        %v301 = vld [vmem:[%s213 + $0xe8] sm:$0xff]
        %v302 = vld [vmem:[%s213 + $0xf0] sm:$0xff]
        %v303 = vld [vmem:[%s213 + $0xf8] sm:$0xff]
        %v304 = vld [vmem:[%s213 + $0x100] sm:$0xff]
        %v305 = vld [vmem:[%s213 + $0x108] sm:$0xff]
        %v306 = vld [vmem:[%s213 + $0x110] sm:$0xff]
        %v307 = vld [vmem:[%s213 + $0x118] sm:$0xff]
        %v308 = vld [vmem:[%s223] sm:$0xff]
        %v309 = vld [vmem:[%s223 + $0x8] sm:$0xff]
        %v310 = vld [vmem:[%s223 + $0x10] sm:$0xff]
        %v311 = vld [vmem:[%s223 + $0x18] sm:$0xff]
        %v312 = vld [vmem:[%s223 + $0x20] sm:$0xff]
        %v313 = vld [vmem:[%s223 + $0x28] sm:$0xff]
        %v314 = vld [vmem:[%s223 + $0x30] sm:$0xff]
        %v315 = vld [vmem:[%s223 + $0x38] sm:$0xff]
        %v316 = vld [vmem:[%s223 + $0x40] sm:$0xff]
        %v317 = vld [vmem:[%s223 + $0x48] sm:$0xff]
        %v318 = vld [vmem:[%s223 + $0x50] sm:$0xff]
        %v319 = vld [vmem:[%s223 + $0x58] sm:$0xff]
        %v320 = vld [vmem:[%s223 + $0x60] sm:$0xff]
        %v321 = vld [vmem:[%s223 + $0x68] sm:$0xff]
        %v322 = vld [vmem:[%s223 + $0x70] sm:$0xff]
        %v323 = vld [vmem:[%s223 + $0x78] sm:$0xff]
        %v324 = vld [vmem:[%s223 + $0x80] sm:$0xff]
        %v325 = vld [vmem:[%s223 + $0x88] sm:$0xff]
        %v326 = vld [vmem:[%s223 + $0x90] sm:$0xff]
        %v327 = vld [vmem:[%s223 + $0x98] sm:$0xff]
        %v328 = vld [vmem:[%s223 + $0xa0] sm:$0xff]
        %v329 = vld [vmem:[%s223 + $0xa8] sm:$0xff]
        %v330 = vld [vmem:[%s223 + $0xb0] sm:$0xff]
        %v331 = vld [vmem:[%s223 + $0xb8] sm:$0xff]
        %v332 = vld [vmem:[%s223 + $0xc0] sm:$0xff]
        %v333 = vld [vmem:[%s223 + $0xc8] sm:$0xff]
        %v334 = vld [vmem:[%s223 + $0xd0] sm:$0xff]
        %v335 = vld [vmem:[%s223 + $0xd8] sm:$0xff]
        %v336 = vld [vmem:[%s223 + $0xe0] sm:$0xff]
        %v337 = vld [vmem:[%s223 + $0xe8] sm:$0xff]
        %v338 = vld [vmem:[%s223 + $0xf0] sm:$0xff]
        %v339 = vld [vmem:[%s223 + $0xf8] sm:$0xff]
        %v340 = vld [vmem:[%s223 + $0x100] sm:$0xff]
        %v341 = vld [vmem:[%s223 + $0x108] sm:$0xff]
        %v342 = vld [vmem:[%s223 + $0x110] sm:$0xff]
        %v343 = vld [vmem:[%s223 + $0x118] sm:$0xff]
        %v344 = vsub.f32 %v272, %v308
        %v345 = vsub.f32 %v273, %v309
        %v346 = vsub.f32 %v274, %v310
        %v347 = vsub.f32 %v275, %v311
        %v348 = vsub.f32 %v276, %v312
        %v349 = vsub.f32 %v277, %v313
        %v350 = vsub.f32 %v278, %v314
        %v351 = vsub.f32 %v279, %v315
        %v352 = vsub.f32 %v280, %v316
        %v353 = vsub.f32 %v281, %v317
        %v354 = vsub.f32 %v282, %v318
        %v355 = vsub.f32 %v283, %v319
        %v356 = vsub.f32 %v284, %v320
        %v357 = vsub.f32 %v285, %v321
        %v358 = vsub.f32 %v286, %v322
        %v359 = vsub.f32 %v287, %v323
        %v360 = vsub.f32 %v288, %v324
        %v361 = vsub.f32 %v289, %v325
        %v362 = vsub.f32 %v290, %v326
        %v363 = vsub.f32 %v291, %v327
        %v364 = vsub.f32 %v292, %v328
        %v365 = vsub.f32 %v293, %v329
        %v366 = vsub.f32 %v294, %v330
        %v367 = vsub.f32 %v295, %v331
        %v368 = vsub.f32 %v296, %v332
        %v369 = vsub.f32 %v297, %v333
        %v370 = vsub.f32 %v298, %v334
        %v371 = vsub.f32 %v299, %v335
        %v372 = vsub.f32 %v300, %v336
        %v373 = vsub.f32 %v301, %v337
        %v374 = vsub.f32 %v302, %v338
        %v375 = vsub.f32 %v303, %v339
        %v376 = vsub.f32 %v304, %v340
        %v377 = vsub.f32 %v305, %v341
        %v378 = vsub.f32 %v306, %v342
        %v379 = vsub.f32 %v307, %v343
        %v380 = vmul.f32 %v344, %v344
        %v381 = vmul.f32 %v345, %v345
        %v382 = vmul.f32 %v346, %v346
        %v383 = vmul.f32 %v347, %v347
        %v384 = vmul.f32 %v348, %v348
        %v385 = vmul.f32 %v349, %v349
        %v386 = vmul.f32 %v350, %v350
        %v387 = vmul.f32 %v351, %v351
        %v388 = vmul.f32 %v352, %v352
        %v389 = vmul.f32 %v353, %v353
        %v390 = vmul.f32 %v354, %v354
        %v391 = vmul.f32 %v355, %v355
        %v392 = vmul.f32 %v356, %v356
        %v393 = vmul.f32 %v357, %v357
        %v394 = vmul.f32 %v358, %v358
        %v395 = vmul.f32 %v359, %v359
        %v396 = vmul.f32 %v360, %v360
        %v397 = vmul.f32 %v361, %v361
        %v398 = vmul.f32 %v362, %v362
        %v399 = vmul.f32 %v363, %v363
        %v400 = vmul.f32 %v364, %v364
        %v401 = vmul.f32 %v365, %v365
        %v402 = vmul.f32 %v366, %v366
        %v403 = vmul.f32 %v367, %v367
        %v404 = vmul.f32 %v368, %v368
        %v405 = vmul.f32 %v369, %v369
        %v406 = vmul.f32 %v370, %v370
        %v407 = vmul.f32 %v371, %v371
        %v408 = vmul.f32 %v372, %v372
        %v409 = vmul.f32 %v373, %v373
        %v410 = vmul.f32 %v374, %v374
        %v411 = vmul.f32 %v375, %v375
        %v412 = vmul.f32 %v376, %v376
        %v413 = vmul.f32 %v377, %v377
        %v414 = vmul.f32 %v378, %v378
        %v415 = vmul.f32 %v379, %v379
        %s416 = sadd.s32 %s26, %s27
        %s417 = smul.u32 %s416, 288
        %s418 = ssub.s32 292, %s417
        %p419 = scmp.ge.s32.totalorder %s418, 288
        // Predicated region
        $region41: #{tpu_custom_call.1} parent=27 // pred_check
          %p420 = pneg %p419
        $region42: #{tpu_custom_call.1} parent=27 // pred_check_branch
          %422 = sbr.rel (%p420) target = $region44
        $region43: #{tpu_custom_call.1} parent=27 // pred_region
          %v423 = vld [vmem:[%s249] sm:$0xff]
          %vm424 = vcmask 1031168
          %v425 = vsel %vm424, %v380, 0.0
          %v426 = vsel %vm424, %v381, 0.0
          %v427 = vadd.f32 %v425, %v426
          %v428 = vsel %vm424, %v382, 0.0
          %v429 = vadd.f32 %v427, %v428
          %v430 = vsel %vm424, %v383, 0.0
          %v431 = vadd.f32 %v429, %v430
          %v432 = vsel %vm424, %v384, 0.0
          %v433 = vadd.f32 %v431, %v432
          %v434 = vsel %vm424, %v385, 0.0
          %v435 = vadd.f32 %v433, %v434
          %v436 = vsel %vm424, %v386, 0.0
          %v437 = vadd.f32 %v435, %v436
          %v438 = vsel %vm424, %v387, 0.0
          %v439 = vadd.f32 %v437, %v438
          %v440 = vsel %vm424, %v388, 0.0
          %v441 = vadd.f32 %v439, %v440
          %v442 = vsel %vm424, %v389, 0.0
          %v443 = vadd.f32 %v441, %v442
          %v444 = vsel %vm424, %v390, 0.0
          %v445 = vadd.f32 %v443, %v444
          %v446 = vsel %vm424, %v391, 0.0
          %v447 = vadd.f32 %v445, %v446
          %v448 = vsel %vm424, %v392, 0.0
          %v449 = vadd.f32 %v447, %v448
          %v450 = vsel %vm424, %v393, 0.0
          %v451 = vadd.f32 %v449, %v450
          %v452 = vsel %vm424, %v394, 0.0
          %v453 = vadd.f32 %v451, %v452
          %v454 = vsel %vm424, %v395, 0.0
          %v455 = vadd.f32 %v453, %v454
          %v456 = vsel %vm424, %v396, 0.0
          %v457 = vadd.f32 %v455, %v456
          %v458 = vsel %vm424, %v397, 0.0
          %v459 = vadd.f32 %v457, %v458
          %v460 = vsel %vm424, %v398, 0.0
          %v461 = vadd.f32 %v459, %v460
          %v462 = vsel %vm424, %v399, 0.0
          %v463 = vadd.f32 %v461, %v462
          %v464 = vsel %vm424, %v400, 0.0
          %v465 = vadd.f32 %v463, %v464
          %v466 = vsel %vm424, %v401, 0.0
          %v467 = vadd.f32 %v465, %v466
          %v468 = vsel %vm424, %v402, 0.0
          %v469 = vadd.f32 %v467, %v468
          %v470 = vsel %vm424, %v403, 0.0
          %v471 = vadd.f32 %v469, %v470
          %v472 = vsel %vm424, %v404, 0.0
          %v473 = vadd.f32 %v471, %v472
          %v474 = vsel %vm424, %v405, 0.0
          %v475 = vadd.f32 %v473, %v474
          %v476 = vsel %vm424, %v406, 0.0
          %v477 = vadd.f32 %v475, %v476
          %v478 = vsel %vm424, %v407, 0.0
          %v479 = vadd.f32 %v477, %v478
          %v480 = vsel %vm424, %v408, 0.0
          %v481 = vadd.f32 %v479, %v480
          %v482 = vsel %vm424, %v409, 0.0
          %v483 = vadd.f32 %v481, %v482
          %v484 = vsel %vm424, %v410, 0.0
          %v485 = vadd.f32 %v483, %v484
          %v486 = vsel %vm424, %v411, 0.0
          %v487 = vadd.f32 %v485, %v486
          %v488 = vsel %vm424, %v412, 0.0
          %v489 = vadd.f32 %v487, %v488
          %v490 = vsel %vm424, %v413, 0.0
          %v491 = vadd.f32 %v489, %v490
          %v492 = vsel %vm424, %v414, 0.0
          %v493 = vadd.f32 %v491, %v492
          %v494 = vsel %vm424, %v415, 0.0
          %v495 = vadd.f32 %v493, %v494
          %v496 = vadd.f32 %v423, %v495
          %497 = vst.msk [vmem:[%s249] sm:$0xff] %vm424, %v496
        $region44: #{tpu_custom_call.1} parent=27 // pred_fallthru
          _
        %p498 = scmp.lt.s32.totalorder %s418, 288
        // Predicated region
        $region45: #{tpu_custom_call.1} parent=27 // pred_check
          %p499 = pneg %p498
        $region46: #{tpu_custom_call.1} parent=27 // pred_check_branch
          %501 = sbr.rel (%p499) target = $region48
        $region47: #{tpu_custom_call.1} parent=27 // pred_region
          %v502 = vlaneseq
          %v503 = vshrl.u32 %v502, 7
          %v504 = vadd.s32 %v503, 8
          %v505 = vadd.s32 %v503, 16
          %v506 = vadd.s32 %v503, 24
          %v507 = vadd.s32 %v503, 32
          %v508 = vadd.s32 %v503, 40
          %v509 = vadd.s32 %v503, 48
          %v510 = vadd.s32 %v503, 56
          %v511 = vadd.s32 %v503, 64
          %v512 = vadd.s32 %v503, 72
          %v513 = vadd.s32 %v503, 80
          %v514 = vadd.s32 %v503, 88
          %v515 = vadd.s32 %v503, 96
          %v516 = vadd.s32 %v503, 104
          %v517 = vadd.s32 %v503, 112
          %v518 = vadd.s32 %v503, 120
          %v519 = vadd.s32 %v503, 128
          %v520 = vadd.s32 %v503, 136
          %v521 = vadd.s32 %v503, 144
          %v522 = vadd.s32 %v503, 152
          %v523 = vadd.s32 %v503, 160
          %v524 = vadd.s32 %v503, 168
          %v525 = vadd.s32 %v503, 176
          %v526 = vadd.s32 %v503, 184
          %v527 = vadd.s32 %v503, 192
          %v528 = vadd.s32 %v503, 200
          %v529 = vadd.s32 %v503, 208
          %v530 = vadd.s32 %v503, 216
          %v531 = vadd.s32 %v503, 224
          %v532 = vadd.s32 %v503, 232
          %v533 = vadd.s32 %v503, 240
          %v534 = vadd.s32 %v503, 248
          %v535 = vadd.s32 %v503, 256
          %v536 = vadd.s32 %v503, 264
          %v537 = vadd.s32 %v503, 272
          %v538 = vadd.s32 %v503, 280
          %v539 = vstv %s418
          %vm540 = vcmp.lt.s32.totalorder %v503, %v539
          %vm541 = vcmp.lt.s32.totalorder %v504, %v539
          %vm542 = vcmp.lt.s32.totalorder %v505, %v539
          %vm543 = vcmp.lt.s32.totalorder %v506, %v539
          %vm544 = vcmp.lt.s32.totalorder %v507, %v539
          %vm545 = vcmp.lt.s32.totalorder %v508, %v539
          %vm546 = vcmp.lt.s32.totalorder %v509, %v539
          %vm547 = vcmp.lt.s32.totalorder %v510, %v539
          %vm548 = vcmp.lt.s32.totalorder %v511, %v539
          %vm549 = vcmp.lt.s32.totalorder %v512, %v539
          %vm550 = vcmp.lt.s32.totalorder %v513, %v539
          %vm551 = vcmp.lt.s32.totalorder %v514, %v539
          %vm552 = vcmp.lt.s32.totalorder %v515, %v539
          %vm553 = vcmp.lt.s32.totalorder %v516, %v539
          %vm554 = vcmp.lt.s32.totalorder %v517, %v539
          %vm555 = vcmp.lt.s32.totalorder %v518, %v539
          %vm556 = vcmp.lt.s32.totalorder %v519, %v539
          %vm557 = vcmp.lt.s32.totalorder %v520, %v539
          %vm558 = vcmp.lt.s32.totalorder %v521, %v539
          %vm559 = vcmp.lt.s32.totalorder %v522, %v539
          %vm560 = vcmp.lt.s32.totalorder %v523, %v539
          %vm561 = vcmp.lt.s32.totalorder %v524, %v539
          %vm562 = vcmp.lt.s32.totalorder %v525, %v539
          %vm563 = vcmp.lt.s32.totalorder %v526, %v539
          %vm564 = vcmp.lt.s32.totalorder %v527, %v539
          %vm565 = vcmp.lt.s32.totalorder %v528, %v539
          %vm566 = vcmp.lt.s32.totalorder %v529, %v539
          %vm567 = vcmp.lt.s32.totalorder %v530, %v539
          %vm568 = vcmp.lt.s32.totalorder %v531, %v539
          %vm569 = vcmp.lt.s32.totalorder %v532, %v539
          %vm570 = vcmp.lt.s32.totalorder %v533, %v539
          %vm571 = vcmp.lt.s32.totalorder %v534, %v539
          %vm572 = vcmp.lt.s32.totalorder %v535, %v539
          %vm573 = vcmp.lt.s32.totalorder %v536, %v539
          %vm574 = vcmp.lt.s32.totalorder %v537, %v539
          %vm575 = vcmp.lt.s32.totalorder %v538, %v539
          %v576 = vsel %vm540, %v380, 0.0
          %v577 = vsel %vm541, %v381, 0.0
          %v578 = vsel %vm542, %v382, 0.0
          %v579 = vsel %vm543, %v383, 0.0
          %v580 = vsel %vm544, %v384, 0.0
          %v581 = vsel %vm545, %v385, 0.0
          %v582 = vsel %vm546, %v386, 0.0
          %v583 = vsel %vm547, %v387, 0.0
          %v584 = vsel %vm548, %v388, 0.0
          %v585 = vsel %vm549, %v389, 0.0
          %v586 = vsel %vm550, %v390, 0.0
          %v587 = vsel %vm551, %v391, 0.0
          %v588 = vsel %vm552, %v392, 0.0
          %v589 = vsel %vm553, %v393, 0.0
          %v590 = vsel %vm554, %v394, 0.0
          %v591 = vsel %vm555, %v395, 0.0
          %v592 = vsel %vm556, %v396, 0.0
          %v593 = vsel %vm557, %v397, 0.0
          %v594 = vsel %vm558, %v398, 0.0
          %v595 = vsel %vm559, %v399, 0.0
          %v596 = vsel %vm560, %v400, 0.0
          %v597 = vsel %vm561, %v401, 0.0
          %v598 = vsel %vm562, %v402, 0.0
          %v599 = vsel %vm563, %v403, 0.0
          %v600 = vsel %vm564, %v404, 0.0
          %v601 = vsel %vm565, %v405, 0.0
          %v602 = vsel %vm566, %v406, 0.0
          %v603 = vsel %vm567, %v407, 0.0
          %v604 = vsel %vm568, %v408, 0.0
          %v605 = vsel %vm569, %v409, 0.0
          %v606 = vsel %vm570, %v410, 0.0
          %v607 = vsel %vm571, %v411, 0.0
          %v608 = vsel %vm572, %v412, 0.0
          %v609 = vsel %vm573, %v413, 0.0
          %v610 = vsel %vm574, %v414, 0.0
          %v611 = vsel %vm575, %v415, 0.0
          %v612 = vld [vmem:[%s249] sm:$0xff]
          %vm613 = vcmask 1031168
          %v614 = vsel %vm613, %v576, 0.0
          %v615 = vsel %vm613, %v577, 0.0
          %v616 = vadd.f32 %v614, %v615
          %v617 = vsel %vm613, %v578, 0.0
          %v618 = vadd.f32 %v616, %v617
          %v619 = vsel %vm613, %v579, 0.0
          %v620 = vadd.f32 %v618, %v619
          %v621 = vsel %vm613, %v580, 0.0
          %v622 = vadd.f32 %v620, %v621
          %v623 = vsel %vm613, %v581, 0.0
          %v624 = vadd.f32 %v622, %v623
          %v625 = vsel %vm613, %v582, 0.0
          %v626 = vadd.f32 %v624, %v625
          %v627 = vsel %vm613, %v583, 0.0
          %v628 = vadd.f32 %v626, %v627
          %v629 = vsel %vm613, %v584, 0.0
          %v630 = vadd.f32 %v628, %v629
          %v631 = vsel %vm613, %v585, 0.0
          %v632 = vadd.f32 %v630, %v631
          %v633 = vsel %vm613, %v586, 0.0
          %v634 = vadd.f32 %v632, %v633
          %v635 = vsel %vm613, %v587, 0.0
          %v636 = vadd.f32 %v634, %v635
          %v637 = vsel %vm613, %v588, 0.0
          %v638 = vadd.f32 %v636, %v637
          %v639 = vsel %vm613, %v589, 0.0
          %v640 = vadd.f32 %v638, %v639
          %v641 = vsel %vm613, %v590, 0.0
          %v642 = vadd.f32 %v640, %v641
          %v643 = vsel %vm613, %v591, 0.0
          %v644 = vadd.f32 %v642, %v643
          %v645 = vsel %vm613, %v592, 0.0
          %v646 = vadd.f32 %v644, %v645
          %v647 = vsel %vm613, %v593, 0.0
          %v648 = vadd.f32 %v646, %v647
          %v649 = vsel %vm613, %v594, 0.0
          %v650 = vadd.f32 %v648, %v649
          %v651 = vsel %vm613, %v595, 0.0
          %v652 = vadd.f32 %v650, %v651
          %v653 = vsel %vm613, %v596, 0.0
          %v654 = vadd.f32 %v652, %v653
          %v655 = vsel %vm613, %v597, 0.0
          %v656 = vadd.f32 %v654, %v655
          %v657 = vsel %vm613, %v598, 0.0
          %v658 = vadd.f32 %v656, %v657
          %v659 = vsel %vm613, %v599, 0.0
          %v660 = vadd.f32 %v658, %v659
          %v661 = vsel %vm613, %v600, 0.0
          %v662 = vadd.f32 %v660, %v661
          %v663 = vsel %vm613, %v601, 0.0
          %v664 = vadd.f32 %v662, %v663
          %v665 = vsel %vm613, %v602, 0.0
          %v666 = vadd.f32 %v664, %v665
          %v667 = vsel %vm613, %v603, 0.0
          %v668 = vadd.f32 %v666, %v667
          %v669 = vsel %vm613, %v604, 0.0
          %v670 = vadd.f32 %v668, %v669
          %v671 = vsel %vm613, %v605, 0.0
          %v672 = vadd.f32 %v670, %v671
          %v673 = vsel %vm613, %v606, 0.0
          %v674 = vadd.f32 %v672, %v673
          %v675 = vsel %vm613, %v607, 0.0
          %v676 = vadd.f32 %v674, %v675
          %v677 = vsel %vm613, %v608, 0.0
          %v678 = vadd.f32 %v676, %v677
          %v679 = vsel %vm613, %v609, 0.0
          %v680 = vadd.f32 %v678, %v679
          %v681 = vsel %vm613, %v610, 0.0
          %v682 = vadd.f32 %v680, %v681
          %v683 = vsel %vm613, %v611, 0.0
          %v684 = vadd.f32 %v682, %v683
          %v685 = vadd.f32 %v612, %v684
          %686 = vst.msk [vmem:[%s249] sm:$0xff] %vm613, %v685
        $region48: #{tpu_custom_call.1} parent=27 // pred_fallthru
          _
        %s687 = sand.u32 %s106, 1
        %s688 = scalar_lea.sflag [#allocation4], %s687
        %s689 = sand.u32 %s106, 1
        %s690 = smul.addr %s689, 8
        %s691 = scalar_lea.vmem [#allocation7], %s690
        // Predicated region
        $region49: #{tpu_custom_call.1} parent=27 // pred_check
          %p692 = pneg %p116
        $region50: #{tpu_custom_call.1} parent=27 // pred_check_branch
          %694 = sbr.rel (%p692) target = $region52
        $region51: #{tpu_custom_call.1} parent=27 // pred_region
          %696 = vsyncadd %s688, 0
          %s697 = smul.addr %s26, 8
          %s698 = scalar_lea.hbm %s2, %s697
          %s700 = sshll.u32 %s691, 4
          %s701 = int_to_ptr.vmem [resolvable:$true] %s700
          %s702 = sshll.u32 %s698, 4
          %s703 = int_to_ptr.hbm [resolvable:$true] %s702
          %705 = dma.vmem_to_hbm [thread:$0]  %s701, 128, %s703, %s688
        $region52: #{tpu_custom_call.1} parent=27 // pred_fallthru
          _
      $region28: #{tpu_custom_call.1} parent=5 // pred_fallthru
        _
      %p706 = scmp.le.s32.totalorder 2, %s17
      // Predicated region
      $region53: #{tpu_custom_call.1} parent=5 // pred_check
        %p707 = pneg %p706
      $region54: #{tpu_custom_call.1} parent=5 // pred_check_branch
        %709 = sbr.rel (%p707) target = $region56
      $region55: #{tpu_custom_call.1} parent=5 // pred_region
        %s710 = ssub.s32 %s17, 2
        // Predicated region
        $region57: #{tpu_custom_call.1} parent=55 // pred_check
          %p711 = pneg %p122
        $region58: #{tpu_custom_call.1} parent=55 // pred_check_branch
          %713 = sbr.rel (%p711) target = $region60
        $region59: #{tpu_custom_call.1} parent=55 // pred_region
          %s714 = sand.u32 %s107, 1
          %s715 = scalar_lea.sflag [#allocation4], %s714
          %s716 = sand.u32 %s107, 1
          %s717 = smul.addr %s716, 8
          %s718 = scalar_lea.vmem [#allocation7], %s717
          %720 = dma.done %s715, 128
        $region60: #{tpu_custom_call.1} parent=55 // pred_fallthru
          _
      $region56: #{tpu_custom_call.1} parent=5 // pred_fallthru
        _
    $region6: #{tpu_custom_call.1} parent=1 // loop_footer
      %s21 = sadd.s32 1, %s17
    $region7: #{tpu_custom_call.1} parent=1 // loop_footer_branch
      %16 = sbr.rel target = $region3
    $region8: #{tpu_custom_call.1} parent=1 // loop_exit
      _
    %721 = vsyncpa [#allocation3], 1
    %s722 = scalar_lea.sflag [#allocation3], 1
    %723 = vsyncpa %s722, 1
    %724 = vsyncpa [#allocation6], 1
    %s725 = scalar_lea.sflag [#allocation6], 1
    %726 = vsyncpa %s725, 1
    %727 = vsyncpa [#allocation4], 1
    %s728 = scalar_lea.sflag [#allocation4], 1
    %729 = vsyncpa %s728, 1

</llo_original>
